<compile_context>
chip_gen: v7x
topology: tpu7x:2x2x1
jax: 0.10.0
libtpu: 0.0.40
codegen_flags: <defaults>
</compile_context>

<pallas_src>
import math
import jax
import jax.numpy as jnp
from jax.experimental import pallas as pl
from jax.experimental.pallas import tpu as pltpu

INPUT_DIM = 2
HIDDEN_DIM = 10
OUTPUT_DIM = 1  # kernel's reduce path assumes this is 1 (matches the module)


def _round_up(n, m):
    return pl.cdiv(n, m) * m


def _mlp_kernel(x_ref, w1_ref, b1_ref, w2c_ref, b2_ref, o_ref):
    # x_ref:   (INPUT_DIM, TB)       lane-dense batch tile
    # w1_ref:  (HIDDEN_DIM, INPUT_DIM)  VMEM-resident across grid steps
    # b1_ref:  (HIDDEN_DIM, 1)
    # w2c_ref: (HIDDEN_DIM, 1)       layer_2 weight as a column
    # b2_ref:  (1, 1)
    # o_ref:   (OUTPUT_DIM, TB)      lane-dense output tile
    x = x_ref[...]
    w1 = w1_ref[...]
    b1 = b1_ref[...]
    w2c = w2c_ref[...]
    b2 = b2_ref[...]

    # Layer 1 on the VPU: contraction dim is only 2, a padded MXU matmul would
    # waste the whole systolic array.  Static unroll over INPUT_DIM.
    h = b1  # (HID, 1) broadcasts against (HID, TB)
    for k in range(INPUT_DIM):
        h = h + w1[:, k:k + 1] * x[k:k + 1, :]         # (HID,1)*(1,TB) -> (HID,TB)
    h = jnp.maximum(h, 0.0)                            # ReLU (VPU)

    # Layer 2: OUTPUT_DIM == 1 -> elementwise mult + sublane reduce (XLU).
    z = jnp.sum(h * w2c, axis=0, keepdims=True) + b2   # (1, TB)

    # sigmoid: exp on EUP, approximate reciprocal also on EUP (free slot).
    o_ref[...] = pl.reciprocal(1.0 + jnp.exp(-z), approx=True)


def mlp_forward(x, w1, b1, w2, b2, *, tb=16384):
    """Forward pass of the MLP.

    x : (B, INPUT_DIM) float32
    w1: (HIDDEN_DIM, INPUT_DIM), b1: (HIDDEN_DIM,)
    w2: (OUTPUT_DIM, HIDDEN_DIM), b2: (OUTPUT_DIM,)
    returns (B, OUTPUT_DIM) float32
    """
    assert OUTPUT_DIM == 1, "reduce-path kernel assumes a single output unit"
    B = x.shape[0]

    # Pick a lane tile: at most `tb`, at least one 128-lane vreg row.
    tb_eff = min(tb, _round_up(B, 128))
    Bp = _round_up(B, tb_eff)

    # Transposed, lane-major layout with zero padding on the batch axis.
    xt = jnp.zeros((INPUT_DIM, Bp), jnp.float32).at[:, :B].set(x.astype(jnp.float32).T)
    b1c = b1.reshape(HIDDEN_DIM, 1).astype(jnp.float32)
    w2c = w2.reshape(OUTPUT_DIM, HIDDEN_DIM).T.astype(jnp.float32)  # (HID, 1)
    b2c = b2.reshape(1, 1).astype(jnp.float32)

    # Explicit VMEM budget: double-buffered x + out tiles plus resident weights.
    itemsize = 4
    tile_bytes = itemsize * (2 * INPUT_DIM * tb_eff + 2 * OUTPUT_DIM * tb_eff)
    w_bytes = itemsize * (HIDDEN_DIM * INPUT_DIM + HIDDEN_DIM
                          + HIDDEN_DIM * OUTPUT_DIM + OUTPUT_DIM)
    vmem_limit = max(2 * (tile_bytes + w_bytes), 4 << 20)   # generous headroom

    out = pl.pallas_call(
        _mlp_kernel,
        out_shape=jax.ShapeDtypeStruct((OUTPUT_DIM, Bp), jnp.float32),
        grid=(Bp // tb_eff,),
        in_specs=[
            pl.BlockSpec((INPUT_DIM, tb_eff), lambda i: (0, i)),      # x tile
            pl.BlockSpec((HIDDEN_DIM, INPUT_DIM), lambda i: (0, 0)),  # w1 (resident)
            pl.BlockSpec((HIDDEN_DIM, 1), lambda i: (0, 0)),          # b1 (resident)
            pl.BlockSpec((HIDDEN_DIM, 1), lambda i: (0, 0)),          # w2 column (resident)
            pl.BlockSpec((1, 1), lambda i: (0, 0)),                   # b2 (resident)
        ],
        out_specs=pl.BlockSpec((OUTPUT_DIM, tb_eff), lambda i: (0, i)),
        compiler_params=pltpu.CompilerParams(
            dimension_semantics=("parallel",),
            vmem_limit_bytes=int(vmem_limit),
        ),
    )(xt, w1.astype(jnp.float32), b1c, w2c, b2c)

    return out[:, :B].T  # back to (B, OUTPUT_DIM)


def init_params(key):
    """Init mirroring the PyTorch module:
      layer_1.weight: nn.init.kaiming_uniform(nonlinearity='relu')
                      -> bound = sqrt(2) * sqrt(3 / fan_in)
      layer_1.bias, layer_2.weight/bias: nn.Linear defaults
                      -> bound = 1 / sqrt(fan_in)
    Weights are kept in PyTorch (out, in) layout; the wrapper handles layout.
    """
    k1, k2, k3, k4 = jax.random.split(key, 4)

    fan_in1 = INPUT_DIM
    bound_w1 = math.sqrt(2.0) * math.sqrt(3.0 / fan_in1)
    w1 = jax.random.uniform(k1, (HIDDEN_DIM, INPUT_DIM), jnp.float32,
                            minval=-bound_w1, maxval=bound_w1)
    bound_b1 = 1.0 / math.sqrt(fan_in1)
    b1 = jax.random.uniform(k2, (HIDDEN_DIM,), jnp.float32,
                            minval=-bound_b1, maxval=bound_b1)

    fan_in2 = HIDDEN_DIM
    bound2 = 1.0 / math.sqrt(fan_in2)
    w2 = jax.random.uniform(k3, (OUTPUT_DIM, HIDDEN_DIM), jnp.float32,
                            minval=-bound2, maxval=bound2)
    b2 = jax.random.uniform(k4, (OUTPUT_DIM,), jnp.float32,
                            minval=-bound2, maxval=bound2)
    return w1, b1, w2, b2


if __name__ == "__main__":
    key = jax.random.PRNGKey(0)
    k_x, k_p = jax.random.split(key)

    batch = 8
    x = jax.random.normal(k_x, (batch, INPUT_DIM), jnp.float32)
    w1, b1, w2, b2 = init_params(k_p)

    out = mlp_forward(x, w1, b1, w2, b2)
    out = jax.block_until_ready(out)

    # Pure-JAX reference (same math as the PyTorch forward).
    h_ref = jnp.maximum(x @ w1.T + b1, 0.0)
    ref = jax.nn.sigmoid(h_ref @ w2.T + b2)

    assert out.shape == (batch, OUTPUT_DIM)
    # approx reciprocal on the EUP -> slightly relaxed tolerance vs exact sigmoid.
    assert jnp.allclose(out, ref, atol=2e-3, rtol=2e-3), "mismatch vs reference"

    print("KERNEL_OK")
</pallas_src>

<mosaic_0001>
module attributes {stable_mosaic.version = 11 : i64} {
  func.func @_mlp_kernel(%arg0: i32, %arg1: memref<2x128xf32, #tpu.memory_space<vmem>>, %arg2: memref<10x2xf32, #tpu.memory_space<vmem>>, %arg3: memref<10x1xf32, #tpu.memory_space<vmem>>, %arg4: memref<10x1xf32, #tpu.memory_space<vmem>>, %arg5: memref<1x1xf32, #tpu.memory_space<vmem>>, %arg6: memref<1x128xf32, #tpu.memory_space<vmem>>) attributes {dimension_semantics = [#tpu.dimension_semantics<parallel>], iteration_bounds = array<i64: 1>, scalar_prefetch = 0 : i64, scratch_operands = 0 : i64, tpu.core_type = #tpu.core_type<tc>, window_params = [{transform_indices = @transform_0, window_bounds = array<i64: 2, 128>}, {pipeline_mode = #tpu.pipeline_mode<synchronous>, transform_indices = @transform_1, window_bounds = array<i64: 10, 2>}, {pipeline_mode = #tpu.pipeline_mode<synchronous>, transform_indices = @transform_2, window_bounds = array<i64: 10, 1>}, {pipeline_mode = #tpu.pipeline_mode<synchronous>, transform_indices = @transform_3, window_bounds = array<i64: 10, 1>}, {pipeline_mode = #tpu.pipeline_mode<synchronous>, transform_indices = @transform_4, window_bounds = array<i64: 1, 1>}, {transform_indices = @transform_5, window_bounds = array<i64: 1, 128>}]} {
    %c0 = arith.constant 0 : index
    %c0_0 = arith.constant 0 : index
    %0 = vector.load %arg1[%c0, %c0_0] : memref<2x128xf32, #tpu.memory_space<vmem>>, vector<2x128xf32>
    %c0_1 = arith.constant 0 : index
    %c0_2 = arith.constant 0 : index
    %1 = vector.load %arg2[%c0_1, %c0_2] : memref<10x2xf32, #tpu.memory_space<vmem>>, vector<10x2xf32>
    %c0_3 = arith.constant 0 : index
    %c0_4 = arith.constant 0 : index
    %2 = vector.load %arg3[%c0_3, %c0_4] : memref<10x1xf32, #tpu.memory_space<vmem>>, vector<10x1xf32>
    %c0_5 = arith.constant 0 : index
    %c0_6 = arith.constant 0 : index
    %3 = vector.load %arg4[%c0_5, %c0_6] : memref<10x1xf32, #tpu.memory_space<vmem>>, vector<10x1xf32>
    %c0_7 = arith.constant 0 : index
    %c0_8 = arith.constant 0 : index
    %4 = vector.load %arg5[%c0_7, %c0_8] : memref<1x1xf32, #tpu.memory_space<vmem>>, vector<1x1xf32>
    %5 = vector.extract_strided_slice %1 {offsets = [0, 0], sizes = [10, 1], strides = [1, 1]} : vector<10x2xf32> to vector<10x1xf32>
    %6 = vector.extract_strided_slice %0 {offsets = [0, 0], sizes = [1, 128], strides = [1, 1]} : vector<2x128xf32> to vector<1x128xf32>
    %7 = vector.broadcast %5 : vector<10x1xf32> to vector<10x128xf32>
    %8 = vector.broadcast %6 : vector<1x128xf32> to vector<10x128xf32>
    %9 = arith.mulf %7, %8 : vector<10x128xf32>
    %10 = vector.broadcast %2 : vector<10x1xf32> to vector<10x128xf32>
    %11 = arith.addf %10, %9 : vector<10x128xf32>
    %12 = vector.extract_strided_slice %1 {offsets = [0, 1], sizes = [10, 1], strides = [1, 1]} : vector<10x2xf32> to vector<10x1xf32>
    %13 = vector.extract_strided_slice %0 {offsets = [1, 0], sizes = [1, 128], strides = [1, 1]} : vector<2x128xf32> to vector<1x128xf32>
    %14 = vector.broadcast %12 : vector<10x1xf32> to vector<10x128xf32>
    %15 = vector.broadcast %13 : vector<1x128xf32> to vector<10x128xf32>
    %16 = arith.mulf %14, %15 : vector<10x128xf32>
    %17 = arith.addf %11, %16 : vector<10x128xf32>
    %cst = arith.constant 0.000000e+00 : f32
    %18 = vector.broadcast %cst : f32 to vector<10x128xf32>
    %19 = arith.maximumf %17, %18 : vector<10x128xf32>
    %20 = vector.broadcast %3 : vector<10x1xf32> to vector<10x128xf32>
    %21 = arith.mulf %19, %20 : vector<10x128xf32>
    %cst_9 = arith.constant dense<0.000000e+00> : vector<128xf32>
    %22 = vector.multi_reduction <add>, %21, %cst_9 [0] : vector<10x128xf32> to vector<128xf32>
    %23 = vector.shape_cast %22 : vector<128xf32> to vector<1x128xf32>
    %24 = vector.broadcast %4 : vector<1x1xf32> to vector<1x128xf32>
    %25 = arith.addf %23, %24 : vector<1x128xf32>
    %cst_10 = arith.constant 0.000000e+00 : f32
    %26 = vector.broadcast %cst_10 : f32 to vector<1x128xf32>
    %27 = arith.subf %26, %25 : vector<1x128xf32>
    %28 = math.exp %27 : vector<1x128xf32>
    %cst_11 = arith.constant 1.000000e+00 : f32
    %29 = vector.broadcast %cst_11 : f32 to vector<1x128xf32>
    %30 = arith.addf %29, %28 : vector<1x128xf32>
    %31 = tpu.reciprocal %30 {approx = true} : vector<1x128xf32> -> vector<1x128xf32>
    %c0_12 = arith.constant 0 : index
    %c0_13 = arith.constant 0 : index
    %32 = vector.load %arg6[%c0_12, %c0_13] : memref<1x128xf32, #tpu.memory_space<vmem>>, vector<1x128xf32>
    tpu.vector_store %arg6[%c0_12, %c0_13], %31 {strides = array<i32>} : memref<1x128xf32, #tpu.memory_space<vmem>>, vector<1x128xf32>,
    return
  }
  func.func @transform_0(%arg0: i32) -> (i32, i32) {
    %c0_i32 = arith.constant 0 : i32
    %c0_i32_0 = arith.constant 0 : i32
    return %c0_i32, %arg0 : i32, i32
  }
  func.func @transform_1(%arg0: i32) -> (i32, i32) {
    %c0_i32 = arith.constant 0 : i32
    %c0_i32_0 = arith.constant 0 : i32
    %c0_i32_1 = arith.constant 0 : i32
    return %c0_i32, %c0_i32_0 : i32, i32
  }
  func.func @transform_2(%arg0: i32) -> (i32, i32) {
    %c0_i32 = arith.constant 0 : i32
    %c0_i32_0 = arith.constant 0 : i32
    %c0_i32_1 = arith.constant 0 : i32
    return %c0_i32, %c0_i32_0 : i32, i32
  }
  func.func @transform_3(%arg0: i32) -> (i32, i32) {
    %c0_i32 = arith.constant 0 : i32
    %c0_i32_0 = arith.constant 0 : i32
    %c0_i32_1 = arith.constant 0 : i32
    return %c0_i32, %c0_i32_0 : i32, i32
  }
  func.func @transform_4(%arg0: i32) -> (i32, i32) {
    %c0_i32 = arith.constant 0 : i32
    %c0_i32_0 = arith.constant 0 : i32
    %c0_i32_1 = arith.constant 0 : i32
    return %c0_i32, %c0_i32_0 : i32, i32
  }
  func.func @transform_5(%arg0: i32) -> (i32, i32) {
    %c0_i32 = arith.constant 0 : i32
    %c0_i32_0 = arith.constant 0 : i32
    return %c0_i32, %arg0 : i32, i32
  }
}

</mosaic_0001>

<llo_original>
// kernel: tpu_custom_call.1
$region0: #{tpu_custom_call.1}
  #allocation0 [shape = 'u32[]', space=smem, size = 0x4, offset = 0x4, fixed_abs, tag = 'smem constant byte address 0x4 - core index']
  #allocation1 [shape = 'u32[144,128]{1,0:T(1,128)}', space=vmem, size = 0x12000, scoped, tag = 'internal scratch']
  #allocation2 [shape = 'f32[1,1]{1,0:T(1,128)S(1)}', space=vmem, size = 0x200, scoped, tag = 'scoped memory for tpu_custom_call.1']
  %s0 = inlined_call_operand.vmem [shape: f32[2,128], index: 0, kind: input, shape index: {}]
  %s1 = inlined_call_operand.vmem [shape: f32[10,2], index: 1, kind: input, shape index: {}]
  %s2 = inlined_call_operand.vmem [shape: f32[10,1], index: 2, kind: input, shape index: {}]
  %s3 = inlined_call_operand.vmem [shape: f32[10,1], index: 3, kind: input, shape index: {}]
  %s4 = inlined_call_operand.<no memory space> [shape: f32[1,1], index: 4, kind: input, shape index: {}]
  %s5 = inlined_call_operand.hbm [shape: f32[1,128], index: 5, kind: output, shape index: {}]
  %s6 = sld [smem:[#allocation0]]
  $region30: #{tpu_custom_call.1} parent=0
    _
  %s8 = ssub.s32 1, %s6
  %s9 = scalar_select 0, %s8, %s6
  %v10 = vstv %s4
  %11 = vst [vmem:[#allocation2] sm:$0x1] %v10
  $region1: #{tpu_custom_call.1} parent=0
    #allocation3 [shape = 'u8[512]{0}', space=vmem, size = 0x400, scoped, tag = 'output window, operand 0, single buffered']
    #allocation4 [shape = 's32[1]{0}', space=sflag, size = 0x4, scoped, tag = 'scoped memory for tpu_custom_call.1']
    %12 = vsyncpa [#allocation4], 0
    // Predicated region
    $region2: #{tpu_custom_call.1} parent=1 // pred_check
      _
    $region3: #{tpu_custom_call.1} parent=1 // pred_check_branch
      %14 = sbr.rel (0) target = $region5
    $region4: #{tpu_custom_call.1} parent=1 // pred_region
      _
    $region5: #{tpu_custom_call.1} parent=1 // pred_fallthru
      _
    // Predicated region
    $region6: #{tpu_custom_call.1} parent=1 // pred_check
      _
    $region7: #{tpu_custom_call.1} parent=1 // pred_check_branch
      %16 = sbr.rel (0) target = $region9
    $region8: #{tpu_custom_call.1} parent=1 // pred_region
      _
    $region9: #{tpu_custom_call.1} parent=1 // pred_fallthru
      _
    // Predicated region
    $region10: #{tpu_custom_call.1} parent=1 // pred_check
      _
    $region11: #{tpu_custom_call.1} parent=1 // pred_check_branch
      %18 = sbr.rel (0) target = $region13
    $region12: #{tpu_custom_call.1} parent=1 // pred_region
      _
    $region13: #{tpu_custom_call.1} parent=1 // pred_fallthru
      _
    // Predicated region
    $region14: #{tpu_custom_call.1} parent=1 // pred_check
      _
    $region15: #{tpu_custom_call.1} parent=1 // pred_check_branch
      %20 = sbr.rel (0) target = $region17
    $region16: #{tpu_custom_call.1} parent=1 // pred_region
      _
    $region17: #{tpu_custom_call.1} parent=1 // pred_fallthru
      _
    // Predicated region
    $region18: #{tpu_custom_call.1} parent=1 // pred_check
      _
    $region19: #{tpu_custom_call.1} parent=1 // pred_check_branch
      %22 = sbr.rel (0) target = $region21
    $region20: #{tpu_custom_call.1} parent=1 // pred_region
      _
    $region21: #{tpu_custom_call.1} parent=1 // pred_fallthru
      _
    %v23 = vld [vmem:[%s0] sm:$0x3]
    %v24 = vld [vmem:[%s1] sm:$0xff]
    %v25 = vld [vmem:[%s1 + $0x8] sm:$0x3]
    %v26 = vld [vmem:[%s2] sm:$0xff]
    %v27 = vld [vmem:[%s2 + $0x8] sm:$0x3]
    %v28 = vld [vmem:[%s3] sm:$0xff]
    %v29 = vld [vmem:[%s3 + $0x8] sm:$0x3]
    %v30 = vld [vmem:[#allocation2] sm:$0x1]
    %32 = vset.pattern.permute.xlu0 0
    %33 = vperm.xlu0 %32, %v24
    %v34 = vpop.permute.xlu0 %33
    %37 = vset.pattern.permute.xlu0 0
    %38 = vperm.xlu0 %37, %v25
    %v39 = vpop.permute.xlu0 %38
    %v41 = vlaneseq
    %v42 = vshrl.u32 %v41, 7
    %v43 = vsub.s32 0, %v42
    %v44 = vrot.slane %v23, %v43
    %v45 = vmul.f32 %v34, %v44
    %v46 = vmul.f32 %v39, %v44
    %48 = vset.pattern.permute.xlu0 0
    %49 = vperm.xlu0 %48, %v26
    %v50 = vpop.permute.xlu0 %49
    %53 = vset.pattern.permute.xlu0 0
    %54 = vperm.xlu0 %53, %v27
    %v55 = vpop.permute.xlu0 %54
    %v57 = vadd.f32 %v50, %v45
    %v58 = vadd.f32 %v55, %v46
    %59 = vset.pattern.permute.xlu0 1
    %60 = vperm.xlu0 %59, %v24
    %v61 = vpop.permute.xlu0 %60
    %63 = vset.pattern.permute.xlu0 1
    %64 = vperm.xlu0 %63, %v25
    %v65 = vpop.permute.xlu0 %64
    %v67 = vlaneseq
    %v68 = vshrl.u32 %v67, 7
    %v69 = vsub.s32 1, %v68
    %v70 = vrot.slane %v23, %v69
    %v71 = vmul.f32 %v61, %v70
    %v72 = vmul.f32 %v65, %v70
    %v73 = vadd.f32 %v57, %v71
    %v74 = vadd.f32 %v58, %v72
    %v75 = vmax.f32 %v73, 0.0
    %v76 = vmax.f32 %v74, 0.0
    %78 = vset.pattern.permute.xlu0 0
    %79 = vperm.xlu0 %78, %v28
    %v80 = vpop.permute.xlu0 %79
    %83 = vset.pattern.permute.xlu0 0
    %84 = vperm.xlu0 %83, %v29
    %v85 = vpop.permute.xlu0 %84
    %v87 = vmul.f32 %v75, %v80
    %v88 = vmul.f32 %v76, %v85
    %vm89 = vcmask 1041408
    %v90 = vsel %vm89, %v88, 0.0
    %v91 = vadd.f32 %v87, %v90
    %v92 = vrot.slane %v91, 4
    %v93 = vadd.f32 %v91, %v92
    %v94 = vrot.slane %v93, 2
    %v95 = vadd.f32 %v93, %v94
    %v96 = vrot.slane %v95, 1
    %v97 = vadd.f32 %v95, %v96
    %99 = vset.pattern.permute.xlu0 0
    %100 = vperm.xlu0 %99, %v30
    %v101 = vpop.permute.xlu0 %100
    %v103 = vlaneseq
    %v104 = vshrl.u32 %v103, 7
    %v105 = vsub.s32 0, %v104
    %v106 = vrot.slane %v101, %v105
    %v107 = vadd.f32 %v97, %v106
    %v108 = vsub.f32 0.0, %v107
    %v109 = vmul.f32 %v108, 1.442695
    %v110 = vpow.pop %v109
    %v111 = vadd.f32 %v110, 1.0
    %v112 = vrcp.pop %v111
    %113 = vst [vmem:[#allocation3] sm:$0x1] %v112
    // Predicated region
    $region22: #{tpu_custom_call.1} parent=1 // pred_check
      _
    $region23: #{tpu_custom_call.1} parent=1 // pred_check_branch
      %115 = sbr.rel (0) target = $region25
    $region24: #{tpu_custom_call.1} parent=1 // pred_region
      %s117 = ssub.s32 16, 16
      %118 = vsyncadd [#allocation4], %s117
      %s120 = sshll.u32 [#allocation3], 4
      %s121 = int_to_ptr.vmem [resolvable:$true] %s120
      %123 = dma.vmem_to_hbm [thread:$0]  %s121, 16, %s5, [#allocation4]
    $region25: #{tpu_custom_call.1} parent=1 // pred_fallthru
      _
    // Predicated region
    $region26: #{tpu_custom_call.1} parent=1 // pred_check
      _
    $region27: #{tpu_custom_call.1} parent=1 // pred_check_branch
      %125 = sbr.rel (0) target = $region29
    $region28: #{tpu_custom_call.1} parent=1 // pred_region
      %126 = dma.done [#allocation4], 16
    $region29: #{tpu_custom_call.1} parent=1 // pred_fallthru
      _
    %127 = vsyncpa [#allocation4], 1

</llo_original>
